<compile_context>
chip_gen: v7x
topology: tpu7x:2x2x1
jax: 0.10.0
libtpu: 0.0.40
codegen_flags: <defaults>
</compile_context>

<pallas_src>
import jax
import jax.numpy as jnp
from jax.experimental import pallas as pl
from jax.experimental.pallas import tpu as pltpu

INPUT_DIM = 768
HIDDEN_DIMS = (256, 128, 64)
OUTPUT_DIM = 32
LANE = 128  # lane width: intermediate tail layer padded up to this


def _round_up(n, m):
    return ((n + m - 1) // m) * m


def mlp_kernel(x_ref,
               w1_ref, b1_ref,
               w2_ref, b2_ref,
               w3_ref, b3_ref,
               w4_ref, b4_ref,
               o_ref):
    # Entire fused classifier for one batch tile; all weights resident in VMEM.
    # fp32 x is cast to bf16 in-kernel (hidden under DMA slack); MXU matmuls
    # accumulate in fp32; bias add + ReLU run on the VPU in fp32.
    x_bf = x_ref[...].astype(jnp.bfloat16)
    h = jnp.dot(x_bf, w1_ref[...], preferred_element_type=jnp.float32)
    h = jnp.maximum(h + b1_ref[...], 0.0)                       # 768 -> 256, ReLU
    h = jnp.dot(h.astype(jnp.bfloat16), w2_ref[...],
                preferred_element_type=jnp.float32)
    h = jnp.maximum(h + b2_ref[...], 0.0)                       # 256 -> 128, ReLU
    h = jnp.dot(h.astype(jnp.bfloat16), w3_ref[...],
                preferred_element_type=jnp.float32)
    h = jnp.maximum(h + b3_ref[...], 0.0)                       # 128 -> 128 (64 real), ReLU
    h = jnp.dot(h.astype(jnp.bfloat16), w4_ref[...],
                preferred_element_type=jnp.float32)
    o_ref[...] = (h + b4_ref[...]).astype(o_ref.dtype)          # 128 -> 32
    # TODO(synk): dropout omitted (inference/eval semantics -> identity).


def prepare_params(params):
    """One-time parameter prep (pad + cast). Run at load time, NOT per call.

    Zero-padding is numerically exact: padded W3 columns give activations that
    are exactly 0 after ReLU, and the padded W4 rows multiply those zeros.
    """
    (w1, b1), (w2, b2), (w3, b3), (w4, b4) = params
    w1_bf = w1.astype(jnp.bfloat16)                                    # (768, 256)
    w2_bf = w2.astype(jnp.bfloat16)                                    # (256, 128)
    w3_bf = jnp.pad(w3, ((0, 0), (0, LANE - w3.shape[1]))
                    ).astype(jnp.bfloat16)                             # (128, 128)
    w4_bf = jnp.pad(w4, ((0, LANE - w4.shape[0]), (0, 0))
                    ).astype(jnp.bfloat16)                             # (128, 32)
    b1f = b1.astype(jnp.float32)                                       # (1, 256)
    b2f = b2.astype(jnp.float32)                                       # (1, 128)
    b3f = jnp.pad(b3, ((0, 0), (0, LANE - b3.shape[1]))
                  ).astype(jnp.float32)                                # (1, 128)
    b4f = b4.astype(jnp.float32)                                       # (1, 32)
    return (w1_bf, b1f, w2_bf, b2f, w3_bf, b3f, w4_bf, b4f)


def classifier_forward(x, prepared_params, *, block_m=1024):
    """x: [B, 768] fp32 (or bf16). prepared_params from prepare_params().
    Returns [B, 32] fp32."""
    B, D = x.shape
    assert D == INPUT_DIM
    w1_bf, b1f, w2_bf, b2f, w3_bf, b3f, w4_bf, b4f = prepared_params

    # --- tiling --------------------------------------------------------------
    if B > 16:
        # Always >= 2 grid steps so both v7x TensorCores get work; 16-row
        # aligned for bf16 sublane packing of the intermediate activations.
        bm = min(block_m, _round_up(pl.cdiv(B, 2), 16))
    else:
        bm = _round_up(max(B, 1), 8)
    grid = (pl.cdiv(B, bm),)

    def full(arr):
        n = arr.ndim
        return pl.BlockSpec(arr.shape, lambda i, _n=n: (0,) * _n)

    out = pl.pallas_call(
        mlp_kernel,
        out_shape=jax.ShapeDtypeStruct((B, OUTPUT_DIM), jnp.float32),
        grid_spec=pltpu.PrefetchScalarGridSpec(
            num_scalar_prefetch=0,
            grid=grid,
            in_specs=[
                pl.BlockSpec((bm, INPUT_DIM), lambda i: (i, 0)),
                full(w1_bf), full(b1f),
                full(w2_bf), full(b2f),
                full(w3_bf), full(b3f),
                full(w4_bf), full(b4f),
            ],
            # Last dim (32) equals the full array dim, so the (8,128) rule is
            # satisfied; masked vst cost is free filler in a DMA-bound kernel.
            out_specs=pl.BlockSpec((bm, OUTPUT_DIM), lambda i: (i, 0)),
        ),
        compiler_params=pltpu.CompilerParams(
            dimension_semantics=("parallel",)),
    )(x, w1_bf, b1f, w2_bf, b2f, w3_bf, b3f, w4_bf, b4f)

    return out


def init_params(key):
    dims = (INPUT_DIM,) + HIDDEN_DIMS + (OUTPUT_DIM,)
    params = []
    for din, dout in zip(dims[:-1], dims[1:]):
        key, wk = jax.random.split(key)
        # deterministic Kaiming-ish init
        w = jax.random.normal(wk, (din, dout), jnp.float32) * (2.0 / din) ** 0.5
        b = jnp.zeros((1, dout), jnp.float32)   # biases kept 2-D for TPU layout
        params.append((w, b))
    return params


def reference_forward(x, params):
    # Plain fp32 reference (kernel uses bf16 operands with fp32 accumulation,
    # so comparison uses a loose-but-safe tolerance).
    h = x
    for i, (w, b) in enumerate(params):
        h = h @ w + b
        if i < len(params) - 1:
            h = jnp.maximum(h, 0.0)
    return h


if __name__ == "__main__":
    key = jax.random.PRNGKey(0)
    key, xk = jax.random.split(key)
    batch = 8
    x = jax.random.normal(xk, (batch, INPUT_DIM), jnp.float32)

    params = init_params(key)
    prepared = prepare_params(params)          # one-time weight prep

    out = classifier_forward(x, prepared)
    jax.block_until_ready(out)

    ref = reference_forward(x, params)
    assert out.shape == (batch, OUTPUT_DIM)
    assert jnp.allclose(out, ref, atol=5e-2, rtol=5e-2), "mismatch vs reference"

    print("KERNEL_OK")
</pallas_src>

<mosaic_0001>
module attributes {stable_mosaic.version = 11 : i64} {
  func.func @mlp_kernel(%arg0: i32, %arg1: memref<8x768xf32, #tpu.memory_space<vmem>>, %arg2: memref<768x256xbf16, #tpu.memory_space<vmem>>, %arg3: memref<1x256xf32, #tpu.memory_space<vmem>>, %arg4: memref<256x128xbf16, #tpu.memory_space<vmem>>, %arg5: memref<1x128xf32, #tpu.memory_space<vmem>>, %arg6: memref<128x128xbf16, #tpu.memory_space<vmem>>, %arg7: memref<1x128xf32, #tpu.memory_space<vmem>>, %arg8: memref<128x32xbf16, #tpu.memory_space<vmem>>, %arg9: memref<1x32xf32, #tpu.memory_space<vmem>>, %arg10: memref<8x32xf32, #tpu.memory_space<vmem>>) attributes {dimension_semantics = [#tpu.dimension_semantics<parallel>], iteration_bounds = array<i64: 1>, scalar_prefetch = 0 : i64, scratch_operands = 0 : i64, tpu.core_type = #tpu.core_type<tc>, window_params = [{transform_indices = @transform_0, window_bounds = array<i64: 8, 768>}, {pipeline_mode = #tpu.pipeline_mode<synchronous>, transform_indices = @transform_1, window_bounds = array<i64: 768, 256>}, {pipeline_mode = #tpu.pipeline_mode<synchronous>, transform_indices = @transform_2, window_bounds = array<i64: 1, 256>}, {pipeline_mode = #tpu.pipeline_mode<synchronous>, transform_indices = @transform_3, window_bounds = array<i64: 256, 128>}, {pipeline_mode = #tpu.pipeline_mode<synchronous>, transform_indices = @transform_4, window_bounds = array<i64: 1, 128>}, {pipeline_mode = #tpu.pipeline_mode<synchronous>, transform_indices = @transform_5, window_bounds = array<i64: 128, 128>}, {pipeline_mode = #tpu.pipeline_mode<synchronous>, transform_indices = @transform_6, window_bounds = array<i64: 1, 128>}, {pipeline_mode = #tpu.pipeline_mode<synchronous>, transform_indices = @transform_7, window_bounds = array<i64: 128, 32>}, {pipeline_mode = #tpu.pipeline_mode<synchronous>, transform_indices = @transform_8, window_bounds = array<i64: 1, 32>}, {transform_indices = @transform_9, window_bounds = array<i64: 8, 32>}]} {
    %c0 = arith.constant 0 : index
    %c0_0 = arith.constant 0 : index
    %0 = vector.load %arg1[%c0, %c0_0] : memref<8x768xf32, #tpu.memory_space<vmem>>, vector<8x768xf32>
    %1 = arith.truncf %0 : vector<8x768xf32> to vector<8x768xbf16>
    %c0_1 = arith.constant 0 : index
    %c0_2 = arith.constant 0 : index
    %2 = vector.load %arg2[%c0_1, %c0_2] : memref<768x256xbf16, #tpu.memory_space<vmem>>, vector<768x256xbf16>
    %cst = arith.constant dense<0.000000e+00> : vector<8x256xf32>
    %3 = tpu.matmul %1, %2, %cst {dimension_numbers = #tpu.dot_dimension_numbers<[1], [0], [0], [1], [0, 0, 1, 1], [], []>} : vector<8x768xbf16>, vector<768x256xbf16>, vector<8x256xf32> -> vector<8x256xf32>
    %c0_3 = arith.constant 0 : index
    %c0_4 = arith.constant 0 : index
    %4 = vector.load %arg3[%c0_3, %c0_4] : memref<1x256xf32, #tpu.memory_space<vmem>>, vector<1x256xf32>
    %5 = vector.broadcast %4 : vector<1x256xf32> to vector<8x256xf32>
    %6 = arith.addf %3, %5 : vector<8x256xf32>
    %cst_5 = arith.constant 0.000000e+00 : f32
    %7 = vector.broadcast %cst_5 : f32 to vector<8x256xf32>
    %8 = arith.maximumf %6, %7 : vector<8x256xf32>
    %9 = arith.truncf %8 : vector<8x256xf32> to vector<8x256xbf16>
    %c0_6 = arith.constant 0 : index
    %c0_7 = arith.constant 0 : index
    %10 = vector.load %arg4[%c0_6, %c0_7] : memref<256x128xbf16, #tpu.memory_space<vmem>>, vector<256x128xbf16>
    %cst_8 = arith.constant dense<0.000000e+00> : vector<8x128xf32>
    %11 = tpu.matmul %9, %10, %cst_8 {dimension_numbers = #tpu.dot_dimension_numbers<[1], [0], [0], [1], [0, 0, 1, 1], [], []>} : vector<8x256xbf16>, vector<256x128xbf16>, vector<8x128xf32> -> vector<8x128xf32>
    %c0_9 = arith.constant 0 : index
    %c0_10 = arith.constant 0 : index
    %12 = vector.load %arg5[%c0_9, %c0_10] : memref<1x128xf32, #tpu.memory_space<vmem>>, vector<1x128xf32>
    %13 = vector.broadcast %12 : vector<1x128xf32> to vector<8x128xf32>
    %14 = arith.addf %11, %13 : vector<8x128xf32>
    %cst_11 = arith.constant 0.000000e+00 : f32
    %15 = vector.broadcast %cst_11 : f32 to vector<8x128xf32>
    %16 = arith.maximumf %14, %15 : vector<8x128xf32>
    %17 = arith.truncf %16 : vector<8x128xf32> to vector<8x128xbf16>
    %c0_12 = arith.constant 0 : index
    %c0_13 = arith.constant 0 : index
    %18 = vector.load %arg6[%c0_12, %c0_13] : memref<128x128xbf16, #tpu.memory_space<vmem>>, vector<128x128xbf16>
    %cst_14 = arith.constant dense<0.000000e+00> : vector<8x128xf32>
    %19 = tpu.matmul %17, %18, %cst_14 {dimension_numbers = #tpu.dot_dimension_numbers<[1], [0], [0], [1], [0, 0, 1, 1], [], []>} : vector<8x128xbf16>, vector<128x128xbf16>, vector<8x128xf32> -> vector<8x128xf32>
    %c0_15 = arith.constant 0 : index
    %c0_16 = arith.constant 0 : index
    %20 = vector.load %arg7[%c0_15, %c0_16] : memref<1x128xf32, #tpu.memory_space<vmem>>, vector<1x128xf32>
    %21 = vector.broadcast %20 : vector<1x128xf32> to vector<8x128xf32>
    %22 = arith.addf %19, %21 : vector<8x128xf32>
    %cst_17 = arith.constant 0.000000e+00 : f32
    %23 = vector.broadcast %cst_17 : f32 to vector<8x128xf32>
    %24 = arith.maximumf %22, %23 : vector<8x128xf32>
    %25 = arith.truncf %24 : vector<8x128xf32> to vector<8x128xbf16>
    %c0_18 = arith.constant 0 : index
    %c0_19 = arith.constant 0 : index
    %26 = vector.load %arg8[%c0_18, %c0_19] : memref<128x32xbf16, #tpu.memory_space<vmem>>, vector<128x32xbf16>
    %cst_20 = arith.constant dense<0.000000e+00> : vector<8x32xf32>
    %27 = tpu.matmul %25, %26, %cst_20 {dimension_numbers = #tpu.dot_dimension_numbers<[1], [0], [0], [1], [0, 0, 1, 1], [], []>} : vector<8x128xbf16>, vector<128x32xbf16>, vector<8x32xf32> -> vector<8x32xf32>
    %c0_21 = arith.constant 0 : index
    %c0_22 = arith.constant 0 : index
    %28 = vector.load %arg9[%c0_21, %c0_22] : memref<1x32xf32, #tpu.memory_space<vmem>>, vector<1x32xf32>
    %29 = vector.broadcast %28 : vector<1x32xf32> to vector<8x32xf32>
    %30 = arith.addf %27, %29 : vector<8x32xf32>
    %c0_23 = arith.constant 0 : index
    %c0_24 = arith.constant 0 : index
    %31 = vector.load %arg10[%c0_23, %c0_24] : memref<8x32xf32, #tpu.memory_space<vmem>>, vector<8x32xf32>
    tpu.vector_store %arg10[%c0_23, %c0_24], %30 {strides = array<i32>} : memref<8x32xf32, #tpu.memory_space<vmem>>, vector<8x32xf32>,
    return
  }
  func.func @transform_0(%arg0: i32) -> (i32, i32) {
    %c0_i32 = arith.constant 0 : i32
    %c0_i32_0 = arith.constant 0 : i32
    return %arg0, %c0_i32 : i32, i32
  }
  func.func @transform_1(%arg0: i32) -> (i32, i32) {
    %c0_i32 = arith.constant 0 : i32
    %c0_i32_0 = arith.constant 0 : i32
    %c0_i32_1 = arith.constant 0 : i32
    return %c0_i32, %c0_i32_0 : i32, i32
  }
  func.func @transform_2(%arg0: i32) -> (i32, i32) {
    %c0_i32 = arith.constant 0 : i32
    %c0_i32_0 = arith.constant 0 : i32
    %c0_i32_1 = arith.constant 0 : i32
    return %c0_i32, %c0_i32_0 : i32, i32
  }
  func.func @transform_3(%arg0: i32) -> (i32, i32) {
    %c0_i32 = arith.constant 0 : i32
    %c0_i32_0 = arith.constant 0 : i32
    %c0_i32_1 = arith.constant 0 : i32
    return %c0_i32, %c0_i32_0 : i32, i32
  }
  func.func @transform_4(%arg0: i32) -> (i32, i32) {
    %c0_i32 = arith.constant 0 : i32
    %c0_i32_0 = arith.constant 0 : i32
    %c0_i32_1 = arith.constant 0 : i32
    return %c0_i32, %c0_i32_0 : i32, i32
  }
  func.func @transform_5(%arg0: i32) -> (i32, i32) {
    %c0_i32 = arith.constant 0 : i32
    %c0_i32_0 = arith.constant 0 : i32
    %c0_i32_1 = arith.constant 0 : i32
    return %c0_i32, %c0_i32_0 : i32, i32
  }
  func.func @transform_6(%arg0: i32) -> (i32, i32) {
    %c0_i32 = arith.constant 0 : i32
    %c0_i32_0 = arith.constant 0 : i32
    %c0_i32_1 = arith.constant 0 : i32
    return %c0_i32, %c0_i32_0 : i32, i32
  }
  func.func @transform_7(%arg0: i32) -> (i32, i32) {
    %c0_i32 = arith.constant 0 : i32
    %c0_i32_0 = arith.constant 0 : i32
    %c0_i32_1 = arith.constant 0 : i32
    return %c0_i32, %c0_i32_0 : i32, i32
  }
  func.func @transform_8(%arg0: i32) -> (i32, i32) {
    %c0_i32 = arith.constant 0 : i32
    %c0_i32_0 = arith.constant 0 : i32
    %c0_i32_1 = arith.constant 0 : i32
    return %c0_i32, %c0_i32_0 : i32, i32
  }
  func.func @transform_9(%arg0: i32) -> (i32, i32) {
    %c0_i32 = arith.constant 0 : i32
    %c0_i32_0 = arith.constant 0 : i32
    return %arg0, %c0_i32 : i32, i32
  }
}

</mosaic_0001>

<llo_original>
// kernel: tpu_custom_call.1
$region0: #{tpu_custom_call.1}
  #allocation0 [shape = 'u32[]', space=smem, size = 0x4, offset = 0x4, fixed_abs, tag = 'smem constant byte address 0x4 - core index']
  #allocation1 [shape = 'u32[144,128]{1,0:T(1,128)}', space=vmem, size = 0x12000, scoped, tag = 'internal scratch']
  %s0 = inlined_call_operand.hbm [shape: f32[8,768], index: 0, kind: input, shape index: {}]
  %s1 = inlined_call_operand.hbm [shape: bf16[768,256], index: 1, kind: input, shape index: {}]
  %s2 = inlined_call_operand.vmem [shape: f32[1,256], index: 2, kind: input, shape index: {}]
  %s3 = inlined_call_operand.hbm [shape: bf16[256,128], index: 3, kind: input, shape index: {}]
  %s4 = inlined_call_operand.vmem [shape: f32[1,128], index: 4, kind: input, shape index: {}]
  %s5 = inlined_call_operand.vmem [shape: bf16[128,128], index: 5, kind: input, shape index: {}]
  %s6 = inlined_call_operand.vmem [shape: f32[1,128], index: 6, kind: input, shape index: {}]
  %s7 = inlined_call_operand.vmem [shape: bf16[128,32], index: 7, kind: input, shape index: {}]
  %s8 = inlined_call_operand.vmem [shape: f32[1,32], index: 8, kind: input, shape index: {}]
  %s9 = inlined_call_operand.hbm [shape: f32[8,32], index: 9, kind: output, shape index: {}]
  %s10 = sld [smem:[#allocation0]]
  $region58: #{tpu_custom_call.1} parent=0
    _
  %s12 = ssub.s32 1, %s10
  %s13 = scalar_select 0, %s12, %s10
  $region1: #{tpu_custom_call.1} parent=0
    #allocation2 [shape = 'u8[24576]{0}', space=vmem, size = 0x6000, scoped, tag = 'input window, operand 0, single buffered']
    #allocation3 [shape = 's32[1]{0}', space=sflag, size = 0x4, scoped, tag = 'scoped memory for tpu_custom_call.1']
    #allocation4 [shape = 's32[1]{0}', space=sflag, size = 0x4, scoped, tag = 'scoped memory for tpu_custom_call.1']
    #allocation5 [shape = 'u8[393216]{0}', space=vmem, size = 0x60000, scoped, tag = 'input window, operand 1, single buffered']
    #allocation6 [shape = 's32[1]{0}', space=sflag, size = 0x4, scoped, tag = 'scoped memory for tpu_custom_call.1']
    #allocation7 [shape = 'u8[65536]{0}', space=vmem, size = 0x10000, scoped, tag = 'input window, operand 3, single buffered']
    #allocation8 [shape = 'u8[4096]{0}', space=vmem, size = 0x1000, scoped, tag = 'output window, operand 0, single buffered']
    %14 = vsyncpa [#allocation3], 0
    %15 = vsyncpa [#allocation6], 0
    %16 = vsyncpa [#allocation4], 0
    // Predicated region
    $region2: #{tpu_custom_call.1} parent=1 // pred_check
      _
    $region3: #{tpu_custom_call.1} parent=1 // pred_check_branch
      %18 = sbr.rel (0) target = $region5
    $region4: #{tpu_custom_call.1} parent=1 // pred_region
      %s20 = ssub.s32 768, 768
      %21 = vsyncadd [#allocation3], %s20
      %s23 = sshll.u32 [#allocation2], 4
      %s24 = int_to_ptr.vmem [resolvable:$true] %s23
      %26 = dma.hbm_to_vmem [thread:$0]  %s0, 768, %s24, [#allocation3]
    $region5: #{tpu_custom_call.1} parent=1 // pred_fallthru
      _
    // Predicated region
    $region6: #{tpu_custom_call.1} parent=1 // pred_check
      _
    $region7: #{tpu_custom_call.1} parent=1 // pred_check_branch
      %28 = sbr.rel (0) target = $region9
    $region8: #{tpu_custom_call.1} parent=1 // pred_region
      %s30 = ssub.s32 12288, 12288
      %31 = vsyncadd [#allocation6], %s30
      %s32 = sshll.u32 [#allocation5], 4
      %s33 = int_to_ptr.vmem [resolvable:$true] %s32
      %38 = dma.hbm_to_vmem [thread:$0]  %s1, 12288, %s33, [#allocation6], 128, 128, 8
    $region9: #{tpu_custom_call.1} parent=1 // pred_fallthru
      _
    // Predicated region
    $region10: #{tpu_custom_call.1} parent=1 // pred_check
      _
    $region11: #{tpu_custom_call.1} parent=1 // pred_check_branch
      %40 = sbr.rel (0) target = $region13
    $region12: #{tpu_custom_call.1} parent=1 // pred_region
      _
    $region13: #{tpu_custom_call.1} parent=1 // pred_fallthru
      _
    // Predicated region
    $region14: #{tpu_custom_call.1} parent=1 // pred_check
      _
    $region15: #{tpu_custom_call.1} parent=1 // pred_check_branch
      %42 = sbr.rel (0) target = $region17
    $region16: #{tpu_custom_call.1} parent=1 // pred_region
      %s44 = ssub.s32 2048, 2048
      %45 = vsyncadd [#allocation6], %s44
      %s46 = sshll.u32 [#allocation7], 4
      %s47 = int_to_ptr.vmem [resolvable:$true] %s46
      %52 = dma.hbm_to_vmem [thread:$0]  %s3, 2048, %s47, [#allocation6], 64, 64, 4
    $region17: #{tpu_custom_call.1} parent=1 // pred_fallthru
      _
    // Predicated region
    $region18: #{tpu_custom_call.1} parent=1 // pred_check
      _
    $region19: #{tpu_custom_call.1} parent=1 // pred_check_branch
      %54 = sbr.rel (0) target = $region21
    $region20: #{tpu_custom_call.1} parent=1 // pred_region
      _
    $region21: #{tpu_custom_call.1} parent=1 // pred_fallthru
      _
    // Predicated region
    $region22: #{tpu_custom_call.1} parent=1 // pred_check
      _
    $region23: #{tpu_custom_call.1} parent=1 // pred_check_branch
      %56 = sbr.rel (0) target = $region25
    $region24: #{tpu_custom_call.1} parent=1 // pred_region
      _
    $region25: #{tpu_custom_call.1} parent=1 // pred_fallthru
      _
    // Predicated region
    $region26: #{tpu_custom_call.1} parent=1 // pred_check
      _
    $region27: #{tpu_custom_call.1} parent=1 // pred_check_branch
      %58 = sbr.rel (0) target = $region29
    $region28: #{tpu_custom_call.1} parent=1 // pred_region
      _
    $region29: #{tpu_custom_call.1} parent=1 // pred_fallthru
      _
    // Predicated region
    $region30: #{tpu_custom_call.1} parent=1 // pred_check
      _
    $region31: #{tpu_custom_call.1} parent=1 // pred_check_branch
      %60 = sbr.rel (0) target = $region33
    $region32: #{tpu_custom_call.1} parent=1 // pred_region
      _
    $region33: #{tpu_custom_call.1} parent=1 // pred_fallthru
      _
    // Predicated region
    $region34: #{tpu_custom_call.1} parent=1 // pred_check
      _
    $region35: #{tpu_custom_call.1} parent=1 // pred_check_branch
      %62 = sbr.rel (0) target = $region37
    $region36: #{tpu_custom_call.1} parent=1 // pred_region
      _
    $region37: #{tpu_custom_call.1} parent=1 // pred_fallthru
      _
    // Predicated region
    $region38: #{tpu_custom_call.1} parent=1 // pred_check
      _
    $region39: #{tpu_custom_call.1} parent=1 // pred_check_branch
      %64 = sbr.rel (0) target = $region41
    $region40: #{tpu_custom_call.1} parent=1 // pred_region
      %65 = dma.done [#allocation3], 768
    $region41: #{tpu_custom_call.1} parent=1 // pred_fallthru
      _
    // Predicated region
    $region42: #{tpu_custom_call.1} parent=1 // pred_check
      _
    $region43: #{tpu_custom_call.1} parent=1 // pred_check_branch
      %67 = sbr.rel (0) target = $region45
    $region44: #{tpu_custom_call.1} parent=1 // pred_region
      %68 = dma.done [#allocation6], 12288
    $region45: #{tpu_custom_call.1} parent=1 // pred_fallthru
      _
    // Predicated region
    $region46: #{tpu_custom_call.1} parent=1 // pred_check
      _
    $region47: #{tpu_custom_call.1} parent=1 // pred_check_branch
      %70 = sbr.rel (0) target = $region49
    $region48: #{tpu_custom_call.1} parent=1 // pred_region
      %71 = dma.done [#allocation6], 2048
    $region49: #{tpu_custom_call.1} parent=1 // pred_fallthru
      _
    %v73 = vld [vmem:[#allocation2] sm:$0xff]
    %v74 = vld [vmem:[#allocation2 + $0x8] sm:$0xff]
    %v75 = vld [vmem:[#allocation2 + $0x10] sm:$0xff]
    %v76 = vld [vmem:[#allocation2 + $0x18] sm:$0xff]
    %v77 = vld [vmem:[#allocation2 + $0x20] sm:$0xff]
    %v78 = vld [vmem:[#allocation2 + $0x28] sm:$0xff]
    %v79 = vpack.c.bf16 %v73, %v73
    %v80 = vpack.c.bf16 %v74, %v74
    %v81 = vpack.c.bf16 %v75, %v75
    %v82 = vpack.c.bf16 %v76, %v76
    %v83 = vpack.c.bf16 %v77, %v77
    %v84 = vpack.c.bf16 %v78, %v78
    %v85 = vld [vmem:[#allocation5] sm:$0xff]
    %v86 = vld [vmem:[#allocation5 + $0x8] sm:$0xff]
    %v87 = vld [vmem:[#allocation5 + $0x10] sm:$0xff]
    %v88 = vld [vmem:[#allocation5 + $0x18] sm:$0xff]
    %v89 = vld [vmem:[#allocation5 + $0x20] sm:$0xff]
    %v90 = vld [vmem:[#allocation5 + $0x28] sm:$0xff]
    %v91 = vld [vmem:[#allocation5 + $0x30] sm:$0xff]
    %v92 = vld [vmem:[#allocation5 + $0x38] sm:$0xff]
    %v93 = vld [vmem:[#allocation5 + $0x40] sm:$0xff]
    %v94 = vld [vmem:[#allocation5 + $0x48] sm:$0xff]
    %v95 = vld [vmem:[#allocation5 + $0x50] sm:$0xff]
    %v96 = vld [vmem:[#allocation5 + $0x58] sm:$0xff]
    %v97 = vld [vmem:[#allocation5 + $0x60] sm:$0xff]
    %v98 = vld [vmem:[#allocation5 + $0x68] sm:$0xff]
    %v99 = vld [vmem:[#allocation5 + $0x70] sm:$0xff]
    %v100 = vld [vmem:[#allocation5 + $0x78] sm:$0xff]
    %v101 = vld [vmem:[#allocation5 + $0x80] sm:$0xff]
    %v102 = vld [vmem:[#allocation5 + $0x88] sm:$0xff]
    %v103 = vld [vmem:[#allocation5 + $0x90] sm:$0xff]
    %v104 = vld [vmem:[#allocation5 + $0x98] sm:$0xff]
    %v105 = vld [vmem:[#allocation5 + $0xa0] sm:$0xff]
    %v106 = vld [vmem:[#allocation5 + $0xa8] sm:$0xff]
    %v107 = vld [vmem:[#allocation5 + $0xb0] sm:$0xff]
    %v108 = vld [vmem:[#allocation5 + $0xb8] sm:$0xff]
    %v109 = vld [vmem:[#allocation5 + $0xc0] sm:$0xff]
    %v110 = vld [vmem:[#allocation5 + $0xc8] sm:$0xff]
    %v111 = vld [vmem:[#allocation5 + $0xd0] sm:$0xff]
    %v112 = vld [vmem:[#allocation5 + $0xd8] sm:$0xff]
    %v113 = vld [vmem:[#allocation5 + $0xe0] sm:$0xff]
    %v114 = vld [vmem:[#allocation5 + $0xe8] sm:$0xff]
    %v115 = vld [vmem:[#allocation5 + $0xf0] sm:$0xff]
    %v116 = vld [vmem:[#allocation5 + $0xf8] sm:$0xff]
    %v117 = vld [vmem:[#allocation5 + $0x100] sm:$0xff]
    %v118 = vld [vmem:[#allocation5 + $0x108] sm:$0xff]
    %v119 = vld [vmem:[#allocation5 + $0x110] sm:$0xff]
    %v120 = vld [vmem:[#allocation5 + $0x118] sm:$0xff]
    %v121 = vld [vmem:[#allocation5 + $0x120] sm:$0xff]
    %v122 = vld [vmem:[#allocation5 + $0x128] sm:$0xff]
    %v123 = vld [vmem:[#allocation5 + $0x130] sm:$0xff]
    %v124 = vld [vmem:[#allocation5 + $0x138] sm:$0xff]
    %v125 = vld [vmem:[#allocation5 + $0x140] sm:$0xff]
    %v126 = vld [vmem:[#allocation5 + $0x148] sm:$0xff]
    %v127 = vld [vmem:[#allocation5 + $0x150] sm:$0xff]
    %v128 = vld [vmem:[#allocation5 + $0x158] sm:$0xff]
    %v129 = vld [vmem:[#allocation5 + $0x160] sm:$0xff]
    %v130 = vld [vmem:[#allocation5 + $0x168] sm:$0xff]
    %v131 = vld [vmem:[#allocation5 + $0x170] sm:$0xff]
    %v132 = vld [vmem:[#allocation5 + $0x178] sm:$0xff]
    %v133 = vld [vmem:[#allocation5 + $0x180] sm:$0xff]
    %v134 = vld [vmem:[#allocation5 + $0x188] sm:$0xff]
    %v135 = vld [vmem:[#allocation5 + $0x190] sm:$0xff]
    %v136 = vld [vmem:[#allocation5 + $0x198] sm:$0xff]
    %v137 = vld [vmem:[#allocation5 + $0x1a0] sm:$0xff]
    %v138 = vld [vmem:[#allocation5 + $0x1a8] sm:$0xff]
    %v139 = vld [vmem:[#allocation5 + $0x1b0] sm:$0xff]
    %v140 = vld [vmem:[#allocation5 + $0x1b8] sm:$0xff]
    %v141 = vld [vmem:[#allocation5 + $0x1c0] sm:$0xff]
    %v142 = vld [vmem:[#allocation5 + $0x1c8] sm:$0xff]
    %v143 = vld [vmem:[#allocation5 + $0x1d0] sm:$0xff]
    %v144 = vld [vmem:[#allocation5 + $0x1d8] sm:$0xff]
    %v145 = vld [vmem:[#allocation5 + $0x1e0] sm:$0xff]
    %v146 = vld [vmem:[#allocation5 + $0x1e8] sm:$0xff]
    %v147 = vld [vmem:[#allocation5 + $0x1f0] sm:$0xff]
    %v148 = vld [vmem:[#allocation5 + $0x1f8] sm:$0xff]
    %v149 = vld [vmem:[#allocation5 + $0x200] sm:$0xff]
    %v150 = vld [vmem:[#allocation5 + $0x208] sm:$0xff]
    %v151 = vld [vmem:[#allocation5 + $0x210] sm:$0xff]
    %v152 = vld [vmem:[#allocation5 + $0x218] sm:$0xff]
    %v153 = vld [vmem:[#allocation5 + $0x220] sm:$0xff]
    %v154 = vld [vmem:[#allocation5 + $0x228] sm:$0xff]
    %v155 = vld [vmem:[#allocation5 + $0x230] sm:$0xff]
    %v156 = vld [vmem:[#allocation5 + $0x238] sm:$0xff]
    %v157 = vld [vmem:[#allocation5 + $0x240] sm:$0xff]
    %v158 = vld [vmem:[#allocation5 + $0x248] sm:$0xff]
    %v159 = vld [vmem:[#allocation5 + $0x250] sm:$0xff]
    %v160 = vld [vmem:[#allocation5 + $0x258] sm:$0xff]
    %v161 = vld [vmem:[#allocation5 + $0x260] sm:$0xff]
    %v162 = vld [vmem:[#allocation5 + $0x268] sm:$0xff]
    %v163 = vld [vmem:[#allocation5 + $0x270] sm:$0xff]
    %v164 = vld [vmem:[#allocation5 + $0x278] sm:$0xff]
    %v165 = vld [vmem:[#allocation5 + $0x280] sm:$0xff]
    %v166 = vld [vmem:[#allocation5 + $0x288] sm:$0xff]
    %v167 = vld [vmem:[#allocation5 + $0x290] sm:$0xff]
    %v168 = vld [vmem:[#allocation5 + $0x298] sm:$0xff]
    %v169 = vld [vmem:[#allocation5 + $0x2a0] sm:$0xff]
    %v170 = vld [vmem:[#allocation5 + $0x2a8] sm:$0xff]
    %v171 = vld [vmem:[#allocation5 + $0x2b0] sm:$0xff]
    %v172 = vld [vmem:[#allocation5 + $0x2b8] sm:$0xff]
    %v173 = vld [vmem:[#allocation5 + $0x2c0] sm:$0xff]
    %v174 = vld [vmem:[#allocation5 + $0x2c8] sm:$0xff]
    %v175 = vld [vmem:[#allocation5 + $0x2d0] sm:$0xff]
    %v176 = vld [vmem:[#allocation5 + $0x2d8] sm:$0xff]
    %v177 = vld [vmem:[#allocation5 + $0x2e0] sm:$0xff]
    %v178 = vld [vmem:[#allocation5 + $0x2e8] sm:$0xff]
    %v179 = vld [vmem:[#allocation5 + $0x2f0] sm:$0xff]
    %v180 = vld [vmem:[#allocation5 + $0x2f8] sm:$0xff]
    %v181 = vld [vmem:[%s2] sm:$0x3]
    %v183 = vlaneseq
    %v184 = vshrl.u32 %v183, 7
    %v185 = vsub.s32 0, %v184
    %v186 = vrot.slane %v181, %v185
    %v187 = vlaneseq
    %v188 = vshrl.u32 %v187, 7
    %v189 = vsub.s32 1, %v188
    %v190 = vrot.slane %v181, %v189
    %v289 = vunpack.c.l.b16 %v85
    %v290 = vunpack.c.h.b16 %v85
    %v291 = vunpack.c.l.b16 %v86
    %v292 = vunpack.c.h.b16 %v86
    %v293 = vunpack.c.l.b16 %v87
    %v294 = vunpack.c.h.b16 %v87
    %v295 = vunpack.c.l.b16 %v88
    %v296 = vunpack.c.h.b16 %v88
    %v297 = vunpack.c.l.b16 %v89
    %v298 = vunpack.c.h.b16 %v89
    %v299 = vunpack.c.l.b16 %v90
    %v300 = vunpack.c.h.b16 %v90
    %v301 = vunpack.c.l.b16 %v91
    %v302 = vunpack.c.h.b16 %v91
    %v303 = vunpack.c.l.b16 %v92
    %v304 = vunpack.c.h.b16 %v92
    %v305 = vunpack.c.l.b16 %v93
    %v306 = vunpack.c.h.b16 %v93
    %v307 = vunpack.c.l.b16 %v94
    %v308 = vunpack.c.h.b16 %v94
    %v309 = vunpack.c.l.b16 %v95
    %v310 = vunpack.c.h.b16 %v95
    %v311 = vunpack.c.l.b16 %v96
    %v312 = vunpack.c.h.b16 %v96
    %v313 = vunpack.c.l.b16 %v97
    %v314 = vunpack.c.h.b16 %v97
    %v315 = vunpack.c.l.b16 %v98
    %v316 = vunpack.c.h.b16 %v98
    %v317 = vunpack.c.l.b16 %v99
    %v318 = vunpack.c.h.b16 %v99
    %v319 = vunpack.c.l.b16 %v100
    %v320 = vunpack.c.h.b16 %v100
    %v321 = vunpack.c.l.b16 %v101
    %v322 = vunpack.c.h.b16 %v101
    %v323 = vunpack.c.l.b16 %v102
    %v324 = vunpack.c.h.b16 %v102
    %v325 = vunpack.c.l.b16 %v103
    %v326 = vunpack.c.h.b16 %v103
    %v327 = vunpack.c.l.b16 %v104
    %v328 = vunpack.c.h.b16 %v104
    %v329 = vunpack.c.l.b16 %v105
    %v330 = vunpack.c.h.b16 %v105
    %v331 = vunpack.c.l.b16 %v106
    %v332 = vunpack.c.h.b16 %v106
    %v333 = vunpack.c.l.b16 %v107
    %v334 = vunpack.c.h.b16 %v107
    %v335 = vunpack.c.l.b16 %v108
    %v336 = vunpack.c.h.b16 %v108
    %v337 = vunpack.c.l.b16 %v109
    %v338 = vunpack.c.h.b16 %v109
    %v339 = vunpack.c.l.b16 %v110
    %v340 = vunpack.c.h.b16 %v110
    %v341 = vunpack.c.l.b16 %v111
    %v342 = vunpack.c.h.b16 %v111
    %v343 = vunpack.c.l.b16 %v112
    %v344 = vunpack.c.h.b16 %v112
    %v345 = vunpack.c.l.b16 %v113
    %v346 = vunpack.c.h.b16 %v113
    %v347 = vunpack.c.l.b16 %v114
    %v348 = vunpack.c.h.b16 %v114
    %v349 = vunpack.c.l.b16 %v115
    %v350 = vunpack.c.h.b16 %v115
    %v351 = vunpack.c.l.b16 %v116
    %v352 = vunpack.c.h.b16 %v116
    %v353 = vunpack.c.l.b16 %v117
    %v354 = vunpack.c.h.b16 %v117
    %v355 = vunpack.c.l.b16 %v118
    %v356 = vunpack.c.h.b16 %v118
    %v357 = vunpack.c.l.b16 %v119
    %v358 = vunpack.c.h.b16 %v119
    %v359 = vunpack.c.l.b16 %v120
    %v360 = vunpack.c.h.b16 %v120
    %v361 = vunpack.c.l.b16 %v121
    %v362 = vunpack.c.h.b16 %v121
    %v363 = vunpack.c.l.b16 %v122
    %v364 = vunpack.c.h.b16 %v122
    %v365 = vunpack.c.l.b16 %v123
    %v366 = vunpack.c.h.b16 %v123
    %v367 = vunpack.c.l.b16 %v124
    %v368 = vunpack.c.h.b16 %v124
    %v369 = vunpack.c.l.b16 %v125
    %v370 = vunpack.c.h.b16 %v125
    %v371 = vunpack.c.l.b16 %v126
    %v372 = vunpack.c.h.b16 %v126
    %v373 = vunpack.c.l.b16 %v127
    %v374 = vunpack.c.h.b16 %v127
    %v375 = vunpack.c.l.b16 %v128
    %v376 = vunpack.c.h.b16 %v128
    %v377 = vunpack.c.l.b16 %v129
    %v378 = vunpack.c.h.b16 %v129
    %v379 = vunpack.c.l.b16 %v130
    %v380 = vunpack.c.h.b16 %v130
    %v381 = vunpack.c.l.b16 %v131
    %v382 = vunpack.c.h.b16 %v131
    %v383 = vunpack.c.l.b16 %v132
    %v384 = vunpack.c.h.b16 %v132
    %v385 = vunpack.c.l.b16 %v133
    %v386 = vunpack.c.h.b16 %v133
    %v387 = vunpack.c.l.b16 %v134
    %v388 = vunpack.c.h.b16 %v134
    %v389 = vunpack.c.l.b16 %v135
    %v390 = vunpack.c.h.b16 %v135
    %v391 = vunpack.c.l.b16 %v136
    %v392 = vunpack.c.h.b16 %v136
    %v393 = vunpack.c.l.b16 %v137
    %v394 = vunpack.c.h.b16 %v137
    %v395 = vunpack.c.l.b16 %v138
    %v396 = vunpack.c.h.b16 %v138
    %v397 = vunpack.c.l.b16 %v139
    %v398 = vunpack.c.h.b16 %v139
    %v399 = vunpack.c.l.b16 %v140
    %v400 = vunpack.c.h.b16 %v140
    %v401 = vunpack.c.l.b16 %v141
    %v402 = vunpack.c.h.b16 %v141
    %v403 = vunpack.c.l.b16 %v142
    %v404 = vunpack.c.h.b16 %v142
    %v405 = vunpack.c.l.b16 %v143
    %v406 = vunpack.c.h.b16 %v143
    %v407 = vunpack.c.l.b16 %v144
    %v408 = vunpack.c.h.b16 %v144
    %v409 = vunpack.c.l.b16 %v145
    %v410 = vunpack.c.h.b16 %v145
    %v411 = vunpack.c.l.b16 %v146
    %v412 = vunpack.c.h.b16 %v146
    %v413 = vunpack.c.l.b16 %v147
    %v414 = vunpack.c.h.b16 %v147
    %v415 = vunpack.c.l.b16 %v148
    %v416 = vunpack.c.h.b16 %v148
    %v417 = vunpack.c.l.b16 %v149
    %v418 = vunpack.c.h.b16 %v149
    %v419 = vunpack.c.l.b16 %v150
    %v420 = vunpack.c.h.b16 %v150
    %v421 = vunpack.c.l.b16 %v151
    %v422 = vunpack.c.h.b16 %v151
    %v423 = vunpack.c.l.b16 %v152
    %v424 = vunpack.c.h.b16 %v152
    %v425 = vunpack.c.l.b16 %v153
    %v426 = vunpack.c.h.b16 %v153
    %v427 = vunpack.c.l.b16 %v154
    %v428 = vunpack.c.h.b16 %v154
    %v429 = vunpack.c.l.b16 %v155
    %v430 = vunpack.c.h.b16 %v155
    %v431 = vunpack.c.l.b16 %v156
    %v432 = vunpack.c.h.b16 %v156
    %v433 = vunpack.c.l.b16 %v157
    %v434 = vunpack.c.h.b16 %v157
    %v435 = vunpack.c.l.b16 %v158
    %v436 = vunpack.c.h.b16 %v158
    %v437 = vunpack.c.l.b16 %v159
    %v438 = vunpack.c.h.b16 %v159
    %v439 = vunpack.c.l.b16 %v160
    %v440 = vunpack.c.h.b16 %v160
    %v441 = vunpack.c.l.b16 %v161
    %v442 = vunpack.c.h.b16 %v161
    %v443 = vunpack.c.l.b16 %v162
    %v444 = vunpack.c.h.b16 %v162
    %v445 = vunpack.c.l.b16 %v163
    %v446 = vunpack.c.h.b16 %v163
    %v447 = vunpack.c.l.b16 %v164
    %v448 = vunpack.c.h.b16 %v164
    %v449 = vunpack.c.l.b16 %v165
    %v450 = vunpack.c.h.b16 %v165
    %v451 = vunpack.c.l.b16 %v166
    %v452 = vunpack.c.h.b16 %v166
    %v453 = vunpack.c.l.b16 %v167
    %v454 = vunpack.c.h.b16 %v167
    %v455 = vunpack.c.l.b16 %v168
    %v456 = vunpack.c.h.b16 %v168
    %v457 = vunpack.c.l.b16 %v169
    %v458 = vunpack.c.h.b16 %v169
    %v459 = vunpack.c.l.b16 %v170
    %v460 = vunpack.c.h.b16 %v170
    %v461 = vunpack.c.l.b16 %v171
    %v462 = vunpack.c.h.b16 %v171
    %v463 = vunpack.c.l.b16 %v172
    %v464 = vunpack.c.h.b16 %v172
    %v465 = vunpack.c.l.b16 %v173
    %v466 = vunpack.c.h.b16 %v173
    %v467 = vunpack.c.l.b16 %v174
    %v468 = vunpack.c.h.b16 %v174
    %v469 = vunpack.c.l.b16 %v175
    %v470 = vunpack.c.h.b16 %v175
    %v471 = vunpack.c.l.b16 %v176
    %v472 = vunpack.c.h.b16 %v176
    %v473 = vunpack.c.l.b16 %v177
    %v474 = vunpack.c.h.b16 %v177
    %v475 = vunpack.c.l.b16 %v178
    %v476 = vunpack.c.h.b16 %v178
    %v477 = vunpack.c.l.b16 %v179
    %v478 = vunpack.c.h.b16 %v179
    %v479 = vunpack.c.l.b16 %v180
    %v480 = vunpack.c.h.b16 %v180
    %v481 = vpack.c.b16 %v291, %v289
    %v482 = vpack.c.b16 %v292, %v290
    %v483 = vpack.c.b16 %v295, %v293
    %v484 = vpack.c.b16 %v296, %v294
    %v485 = vpack.c.b16 %v299, %v297
    %v486 = vpack.c.b16 %v300, %v298
    %v487 = vpack.c.b16 %v303, %v301
    %v488 = vpack.c.b16 %v304, %v302
    %v489 = vpack.c.b16 %v307, %v305
    %v490 = vpack.c.b16 %v308, %v306
    %v491 = vpack.c.b16 %v311, %v309
    %v492 = vpack.c.b16 %v312, %v310
    %v493 = vpack.c.b16 %v315, %v313
    %v494 = vpack.c.b16 %v316, %v314
    %v495 = vpack.c.b16 %v319, %v317
    %v496 = vpack.c.b16 %v320, %v318
    %v497 = vpack.c.b16 %v323, %v321
    %v498 = vpack.c.b16 %v324, %v322
    %v499 = vpack.c.b16 %v327, %v325
    %v500 = vpack.c.b16 %v328, %v326
    %v501 = vpack.c.b16 %v331, %v329
    %v502 = vpack.c.b16 %v332, %v330
    %v503 = vpack.c.b16 %v335, %v333
    %v504 = vpack.c.b16 %v336, %v334
    %v505 = vpack.c.b16 %v339, %v337
    %v506 = vpack.c.b16 %v340, %v338
    %v507 = vpack.c.b16 %v343, %v341
    %v508 = vpack.c.b16 %v344, %v342
    %v509 = vpack.c.b16 %v347, %v345
    %v510 = vpack.c.b16 %v348, %v346
    %v511 = vpack.c.b16 %v351, %v349
    %v512 = vpack.c.b16 %v352, %v350
    %v513 = vpack.c.b16 %v355, %v353
    %v514 = vpack.c.b16 %v356, %v354
    %v515 = vpack.c.b16 %v359, %v357
    %v516 = vpack.c.b16 %v360, %v358
    %v517 = vpack.c.b16 %v363, %v361
    %v518 = vpack.c.b16 %v364, %v362
    %v519 = vpack.c.b16 %v367, %v365
    %v520 = vpack.c.b16 %v368, %v366
    %v521 = vpack.c.b16 %v371, %v369
    %v522 = vpack.c.b16 %v372, %v370
    %v523 = vpack.c.b16 %v375, %v373
    %v524 = vpack.c.b16 %v376, %v374
    %v525 = vpack.c.b16 %v379, %v377
    %v526 = vpack.c.b16 %v380, %v378
    %v527 = vpack.c.b16 %v383, %v381
    %v528 = vpack.c.b16 %v384, %v382
    %v529 = vpack.c.b16 %v387, %v385
    %v530 = vpack.c.b16 %v388, %v386
    %v531 = vpack.c.b16 %v391, %v389
    %v532 = vpack.c.b16 %v392, %v390
    %v533 = vpack.c.b16 %v395, %v393
    %v534 = vpack.c.b16 %v396, %v394
    %v535 = vpack.c.b16 %v399, %v397
    %v536 = vpack.c.b16 %v400, %v398
    %v537 = vpack.c.b16 %v403, %v401
    %v538 = vpack.c.b16 %v404, %v402
    %v539 = vpack.c.b16 %v407, %v405
    %v540 = vpack.c.b16 %v408, %v406
    %v541 = vpack.c.b16 %v411, %v409
    %v542 = vpack.c.b16 %v412, %v410
    %v543 = vpack.c.b16 %v415, %v413
    %v544 = vpack.c.b16 %v416, %v414
    %v545 = vpack.c.b16 %v419, %v417
    %v546 = vpack.c.b16 %v420, %v418
    %v547 = vpack.c.b16 %v423, %v421
    %v548 = vpack.c.b16 %v424, %v422
    %v549 = vpack.c.b16 %v427, %v425
    %v550 = vpack.c.b16 %v428, %v426
    %v551 = vpack.c.b16 %v431, %v429
    %v552 = vpack.c.b16 %v432, %v430
    %v553 = vpack.c.b16 %v435, %v433
    %v554 = vpack.c.b16 %v436, %v434
    %v555 = vpack.c.b16 %v439, %v437
    %v556 = vpack.c.b16 %v440, %v438
    %v557 = vpack.c.b16 %v443, %v441
    %v558 = vpack.c.b16 %v444, %v442
    %v559 = vpack.c.b16 %v447, %v445
    %v560 = vpack.c.b16 %v448, %v446
    %v561 = vpack.c.b16 %v451, %v449
    %v562 = vpack.c.b16 %v452, %v450
    %v563 = vpack.c.b16 %v455, %v453
    %v564 = vpack.c.b16 %v456, %v454
    %v565 = vpack.c.b16 %v459, %v457
    %v566 = vpack.c.b16 %v460, %v458
    %v567 = vpack.c.b16 %v463, %v461
    %v568 = vpack.c.b16 %v464, %v462
    %v569 = vpack.c.b16 %v467, %v465
    %v570 = vpack.c.b16 %v468, %v466
    %v571 = vpack.c.b16 %v471, %v469
    %v572 = vpack.c.b16 %v472, %v470
    %v573 = vpack.c.b16 %v475, %v473
    %v574 = vpack.c.b16 %v476, %v474
    %v575 = vpack.c.b16 %v479, %v477
    %v576 = vpack.c.b16 %v480, %v478
    %673 = vmatprep.subr.bf16.mxu0 %v482
    %674 = vmatpush1.bf16.msra.mxu0 %v481
    %675 = vmatprep.subr.bf16.mxu0 %v484
    %676 = vmatpush1.bf16.msra.mxu0 %v483
    %677 = vmatprep.subr.bf16.mxu0 %v486
    %678 = vmatpush1.bf16.msra.mxu0 %v485
    %679 = vmatprep.subr.bf16.mxu0 %v488
    %680 = vmatpush1.bf16.msra.mxu0 %v487
    %681 = vmatprep.subr.bf16.mxu0 %v490
    %682 = vmatpush1.bf16.msra.mxu0 %v489
    %683 = vmatprep.subr.bf16.mxu0 %v492
    %684 = vmatpush1.bf16.msra.mxu0 %v491
    %685 = vmatprep.subr.bf16.mxu0 %v494
    %686 = vmatpush1.bf16.msra.mxu0 %v493
    %687 = vmatprep.subr.bf16.mxu0 %v496
    %688 = vmatpush1.bf16.msra.mxu0 %v495
    %689 = vmatprep.subr.bf16.mxu0 %v498
    %690 = vmatpush1.bf16.msra.mxu0 %v497
    %691 = vmatprep.subr.bf16.mxu0 %v500
    %692 = vmatpush1.bf16.msra.mxu0 %v499
    %693 = vmatprep.subr.bf16.mxu0 %v502
    %694 = vmatpush1.bf16.msra.mxu0 %v501
    %695 = vmatprep.subr.bf16.mxu0 %v504
    %696 = vmatpush1.bf16.msra.mxu0 %v503
    %697 = vmatprep.subr.bf16.mxu0 %v506
    %698 = vmatpush1.bf16.msra.mxu0 %v505
    %699 = vmatprep.subr.bf16.mxu0 %v508
    %700 = vmatpush1.bf16.msra.mxu0 %v507
    %701 = vmatprep.subr.bf16.mxu0 %v510
    %702 = vmatpush1.bf16.msra.mxu0 %v509
    %703 = vmatprep.subr.bf16.mxu0 %v512
    %704 = vmatpush1.bf16.msra.mxu0 %v511
    %705 = vmatprep.mubr.bf16.mxu0 %v80
    %706 = vmatmul.mubr.bf16.gmra.mrb[0].mxu0 %v79
    %v707 = vpop.f32.mrb[0].mxu0
    %v708 = vadd.f32 %v186, %v707
    %v709 = vpop.f32.mrb[0].mxu0
    %v710 = vadd.f32 %v190, %v709
    %v711 = vpop.f32.mrb[0].mxu0
    %v712 = vpop.f32.mrb[0].mxu0
    %713 = vdwg.mxu0
    %714 = vmatprep.subr.bf16.mxu0 %v514
    %715 = vmatpush1.bf16.msra.mxu0 %v513
    %716 = vmatprep.subr.bf16.mxu0 %v516
    %717 = vmatpush1.bf16.msra.mxu0 %v515
    %718 = vmatprep.subr.bf16.mxu0 %v518
    %719 = vmatpush1.bf16.msra.mxu0 %v517
    %720 = vmatprep.subr.bf16.mxu0 %v520
    %721 = vmatpush1.bf16.msra.mxu0 %v519
    %722 = vmatprep.subr.bf16.mxu0 %v522
    %723 = vmatpush1.bf16.msra.mxu0 %v521
    %724 = vmatprep.subr.bf16.mxu0 %v524
    %725 = vmatpush1.bf16.msra.mxu0 %v523
    %726 = vmatprep.subr.bf16.mxu0 %v526
    %727 = vmatpush1.bf16.msra.mxu0 %v525
    %728 = vmatprep.subr.bf16.mxu0 %v528
    %729 = vmatpush1.bf16.msra.mxu0 %v527
    %730 = vmatprep.subr.bf16.mxu0 %v530
    %731 = vmatpush1.bf16.msra.mxu0 %v529
    %732 = vmatprep.subr.bf16.mxu0 %v532
    %733 = vmatpush1.bf16.msra.mxu0 %v531
    %734 = vmatprep.subr.bf16.mxu0 %v534
    %735 = vmatpush1.bf16.msra.mxu0 %v533
    %736 = vmatprep.subr.bf16.mxu0 %v536
    %737 = vmatpush1.bf16.msra.mxu0 %v535
    %738 = vmatprep.subr.bf16.mxu0 %v538
    %739 = vmatpush1.bf16.msra.mxu0 %v537
    %740 = vmatprep.subr.bf16.mxu0 %v540
    %741 = vmatpush1.bf16.msra.mxu0 %v539
    %742 = vmatprep.subr.bf16.mxu0 %v542
    %743 = vmatpush1.bf16.msra.mxu0 %v541
    %744 = vmatprep.subr.bf16.mxu0 %v544
    %745 = vmatpush1.bf16.msra.mxu0 %v543
    %746 = vmatprep.mubr.bf16.mxu0 %v82
    %747 = vmatmul.mubr.bf16.gmra.mrb[0].mxu0 %v81
    %v748 = vpop.f32.mrb[0].mxu0
    %v749 = vadd.f32 %v708, %v748
    %v750 = vpop.f32.mrb[0].mxu0
    %v751 = vadd.f32 %v710, %v750
    %v752 = vpop.f32.mrb[0].mxu0
    %v753 = vpop.f32.mrb[0].mxu0
    %754 = vdwg.mxu0
    %755 = vmatprep.subr.bf16.mxu0 %v546
    %756 = vmatpush1.bf16.msra.mxu0 %v545
    %757 = vmatprep.subr.bf16.mxu0 %v548
    %758 = vmatpush1.bf16.msra.mxu0 %v547
    %759 = vmatprep.subr.bf16.mxu0 %v550
    %760 = vmatpush1.bf16.msra.mxu0 %v549
    %761 = vmatprep.subr.bf16.mxu0 %v552
    %762 = vmatpush1.bf16.msra.mxu0 %v551
    %763 = vmatprep.subr.bf16.mxu0 %v554
    %764 = vmatpush1.bf16.msra.mxu0 %v553
    %765 = vmatprep.subr.bf16.mxu0 %v556
    %766 = vmatpush1.bf16.msra.mxu0 %v555
    %767 = vmatprep.subr.bf16.mxu0 %v558
    %768 = vmatpush1.bf16.msra.mxu0 %v557
    %769 = vmatprep.subr.bf16.mxu0 %v560
    %770 = vmatpush1.bf16.msra.mxu0 %v559
    %771 = vmatprep.subr.bf16.mxu0 %v562
    %772 = vmatpush1.bf16.msra.mxu0 %v561
    %773 = vmatprep.subr.bf16.mxu0 %v564
    %774 = vmatpush1.bf16.msra.mxu0 %v563
    %775 = vmatprep.subr.bf16.mxu0 %v566
    %776 = vmatpush1.bf16.msra.mxu0 %v565
    %777 = vmatprep.subr.bf16.mxu0 %v568
    %778 = vmatpush1.bf16.msra.mxu0 %v567
    %779 = vmatprep.subr.bf16.mxu0 %v570
    %780 = vmatpush1.bf16.msra.mxu0 %v569
    %781 = vmatprep.subr.bf16.mxu0 %v572
    %782 = vmatpush1.bf16.msra.mxu0 %v571
    %783 = vmatprep.subr.bf16.mxu0 %v574
    %784 = vmatpush1.bf16.msra.mxu0 %v573
    %785 = vmatprep.subr.bf16.mxu0 %v576
    %786 = vmatpush1.bf16.msra.mxu0 %v575
    %787 = vmatprep.mubr.bf16.mxu0 %v84
    %788 = vmatmul.mubr.bf16.gmra.mrb[0].mxu0 %v83
    %v789 = vpop.f32.mrb[0].mxu0
    %v790 = vadd.f32 %v749, %v789
    %v791 = vpop.f32.mrb[0].mxu0
    %v792 = vadd.f32 %v751, %v791
    %v793 = vpop.f32.mrb[0].mxu0
    %v794 = vpop.f32.mrb[0].mxu0
    %795 = vdwg.mxu0
    %v796 = vmax.f32 %v790, 0.0
    %v797 = vmax.f32 %v792, 0.0
    %v798 = vpack.c.bf16 %v796, %v796
    %v799 = vpack.c.bf16 %v797, %v797
    %v800 = vld [vmem:[#allocation7] sm:$0xf]
    %v801 = vld [vmem:[#allocation7 + $0x4] sm:$0xf]
    %v802 = vld [vmem:[#allocation7 + $0x8] sm:$0xf]
    %v803 = vld [vmem:[#allocation7 + $0xc] sm:$0xf]
    %v804 = vld [vmem:[#allocation7 + $0x10] sm:$0xf]
    %v805 = vld [vmem:[#allocation7 + $0x14] sm:$0xf]
    %v806 = vld [vmem:[#allocation7 + $0x18] sm:$0xf]
    %v807 = vld [vmem:[#allocation7 + $0x1c] sm:$0xf]
    %v808 = vld [vmem:[#allocation7 + $0x20] sm:$0xf]
    %v809 = vld [vmem:[#allocation7 + $0x24] sm:$0xf]
    %v810 = vld [vmem:[#allocation7 + $0x28] sm:$0xf]
    %v811 = vld [vmem:[#allocation7 + $0x2c] sm:$0xf]
    %v812 = vld [vmem:[#allocation7 + $0x30] sm:$0xf]
    %v813 = vld [vmem:[#allocation7 + $0x34] sm:$0xf]
    %v814 = vld [vmem:[#allocation7 + $0x38] sm:$0xf]
    %v815 = vld [vmem:[#allocation7 + $0x3c] sm:$0xf]
    %v816 = vld [vmem:[#allocation7 + $0x40] sm:$0xf]
    %v817 = vld [vmem:[#allocation7 + $0x44] sm:$0xf]
    %v818 = vld [vmem:[#allocation7 + $0x48] sm:$0xf]
    %v819 = vld [vmem:[#allocation7 + $0x4c] sm:$0xf]
    %v820 = vld [vmem:[#allocation7 + $0x50] sm:$0xf]
    %v821 = vld [vmem:[#allocation7 + $0x54] sm:$0xf]
    %v822 = vld [vmem:[#allocation7 + $0x58] sm:$0xf]
    %v823 = vld [vmem:[#allocation7 + $0x5c] sm:$0xf]
    %v824 = vld [vmem:[#allocation7 + $0x60] sm:$0xf]
    %v825 = vld [vmem:[#allocation7 + $0x64] sm:$0xf]
    %v826 = vld [vmem:[#allocation7 + $0x68] sm:$0xf]
    %v827 = vld [vmem:[#allocation7 + $0x6c] sm:$0xf]
    %v828 = vld [vmem:[#allocation7 + $0x70] sm:$0xf]
    %v829 = vld [vmem:[#allocation7 + $0x74] sm:$0xf]
    %v830 = vld [vmem:[#allocation7 + $0x78] sm:$0xf]
    %v831 = vld [vmem:[#allocation7 + $0x7c] sm:$0xf]
    %v832 = vld [vmem:[%s4] sm:$0x1]
    %v834 = vlaneseq
    %v835 = vshrl.u32 %v834, 7
    %v836 = vsub.s32 0, %v835
    %v837 = vrot.slane %v832, %v836
    %v871 = vunpack.c.l.b16 %v800
    %v872 = vunpack.c.l.b16 %v801
    %v873 = vunpack.c.l.b16 %v802
    %v874 = vunpack.c.l.b16 %v803
    %v875 = vunpack.c.l.b16 %v804
    %v876 = vunpack.c.l.b16 %v805
    %v877 = vunpack.c.l.b16 %v806
    %v878 = vunpack.c.l.b16 %v807
    %v879 = vunpack.c.l.b16 %v808
    %v880 = vunpack.c.l.b16 %v809
    %v881 = vunpack.c.l.b16 %v810
    %v882 = vunpack.c.l.b16 %v811
    %v883 = vunpack.c.l.b16 %v812
    %v884 = vunpack.c.l.b16 %v813
    %v885 = vunpack.c.l.b16 %v814
    %v886 = vunpack.c.l.b16 %v815
    %v887 = vunpack.c.l.b16 %v816
    %v888 = vunpack.c.l.b16 %v817
    %v889 = vunpack.c.l.b16 %v818
    %v890 = vunpack.c.l.b16 %v819
    %v891 = vunpack.c.l.b16 %v820
    %v892 = vunpack.c.l.b16 %v821
    %v893 = vunpack.c.l.b16 %v822
    %v894 = vunpack.c.l.b16 %v823
    %v895 = vunpack.c.l.b16 %v824
    %v896 = vunpack.c.l.b16 %v825
    %v897 = vunpack.c.l.b16 %v826
    %v898 = vunpack.c.l.b16 %v827
    %v899 = vunpack.c.l.b16 %v828
    %v900 = vunpack.c.l.b16 %v829
    %v901 = vunpack.c.l.b16 %v830
    %v902 = vunpack.c.l.b16 %v831
    %v903 = vpack.c.b16 %v872, %v871
    %v904 = vpack.c.b16 %v874, %v873
    %v905 = vpack.c.b16 %v876, %v875
    %v906 = vpack.c.b16 %v878, %v877
    %v907 = vpack.c.b16 %v880, %v879
    %v908 = vpack.c.b16 %v882, %v881
    %v909 = vpack.c.b16 %v884, %v883
    %v910 = vpack.c.b16 %v886, %v885
    %v911 = vpack.c.b16 %v888, %v887
    %v912 = vpack.c.b16 %v890, %v889
    %v913 = vpack.c.b16 %v892, %v891
    %v914 = vpack.c.b16 %v894, %v893
    %v915 = vpack.c.b16 %v896, %v895
    %v916 = vpack.c.b16 %v898, %v897
    %v917 = vpack.c.b16 %v900, %v899
    %v918 = vpack.c.b16 %v902, %v901
    %935 = vmatprep.subr.bf16.mxu0 0
    %936 = vmatpush1.bf16.msra.mxu0 %v903
    %937 = vmatprep.subr.bf16.mxu0 0
    %938 = vmatpush1.bf16.msra.mxu0 %v904
    %939 = vmatprep.subr.bf16.mxu0 0
    %940 = vmatpush1.bf16.msra.mxu0 %v905
    %941 = vmatprep.subr.bf16.mxu0 0
    %942 = vmatpush1.bf16.msra.mxu0 %v906
    %943 = vmatprep.subr.bf16.mxu0 0
    %944 = vmatpush1.bf16.msra.mxu0 %v907
    %945 = vmatprep.subr.bf16.mxu0 0
    %946 = vmatpush1.bf16.msra.mxu0 %v908
    %947 = vmatprep.subr.bf16.mxu0 0
    %948 = vmatpush1.bf16.msra.mxu0 %v909
    %949 = vmatprep.subr.bf16.mxu0 0
    %950 = vmatpush1.bf16.msra.mxu0 %v910
    %951 = vmatprep.subr.bf16.mxu0 0
    %952 = vmatpush1.bf16.msra.mxu0 %v911
    %953 = vmatprep.subr.bf16.mxu0 0
    %954 = vmatpush1.bf16.msra.mxu0 %v912
    %955 = vmatprep.subr.bf16.mxu0 0
    %956 = vmatpush1.bf16.msra.mxu0 %v913
    %957 = vmatprep.subr.bf16.mxu0 0
    %958 = vmatpush1.bf16.msra.mxu0 %v914
    %959 = vmatprep.subr.bf16.mxu0 0
    %960 = vmatpush1.bf16.msra.mxu0 %v915
    %961 = vmatprep.subr.bf16.mxu0 0
    %962 = vmatpush1.bf16.msra.mxu0 %v916
    %963 = vmatprep.subr.bf16.mxu0 0
    %964 = vmatpush1.bf16.msra.mxu0 %v917
    %965 = vmatprep.subr.bf16.mxu0 0
    %966 = vmatpush1.bf16.msra.mxu0 %v918
    %967 = vmatprep.mubr.bf16.mxu0 %v799
    %968 = vmatmul.mubr.bf16.gmra.mrb[0].mxu0 %v798
    %v969 = vpop.f32.mrb[0].mxu0
    %v970 = vadd.f32 %v837, %v969
    %v971 = vpop.f32.mrb[0].mxu0
    %v972 = vpop.f32.mrb[0].mxu0
    %v973 = vpop.f32.mrb[0].mxu0
    %974 = vdwg.mxu0
    %v975 = vmax.f32 %v970, 0.0
    %v976 = vpack.c.bf16 %v975, %v975
    %v977 = vld [vmem:[%s5] sm:$0xf]
    %v978 = vld [vmem:[%s5 + $0x4] sm:$0xf]
    %v979 = vld [vmem:[%s5 + $0x8] sm:$0xf]
    %v980 = vld [vmem:[%s5 + $0xc] sm:$0xf]
    %v981 = vld [vmem:[%s5 + $0x10] sm:$0xf]
    %v982 = vld [vmem:[%s5 + $0x14] sm:$0xf]
    %v983 = vld [vmem:[%s5 + $0x18] sm:$0xf]
    %v984 = vld [vmem:[%s5 + $0x1c] sm:$0xf]
    %v985 = vld [vmem:[%s5 + $0x20] sm:$0xf]
    %v986 = vld [vmem:[%s5 + $0x24] sm:$0xf]
    %v987 = vld [vmem:[%s5 + $0x28] sm:$0xf]
    %v988 = vld [vmem:[%s5 + $0x2c] sm:$0xf]
    %v989 = vld [vmem:[%s5 + $0x30] sm:$0xf]
    %v990 = vld [vmem:[%s5 + $0x34] sm:$0xf]
    %v991 = vld [vmem:[%s5 + $0x38] sm:$0xf]
    %v992 = vld [vmem:[%s5 + $0x3c] sm:$0xf]
    %v993 = vld [vmem:[%s6] sm:$0x1]
    %v995 = vlaneseq
    %v996 = vshrl.u32 %v995, 7
    %v997 = vsub.s32 0, %v996
    %v998 = vrot.slane %v993, %v997
    %v1016 = vunpack.c.l.b16 %v977
    %v1017 = vunpack.c.l.b16 %v978
    %v1018 = vunpack.c.l.b16 %v979
    %v1019 = vunpack.c.l.b16 %v980
    %v1020 = vunpack.c.l.b16 %v981
    %v1021 = vunpack.c.l.b16 %v982
    %v1022 = vunpack.c.l.b16 %v983
    %v1023 = vunpack.c.l.b16 %v984
    %v1024 = vunpack.c.l.b16 %v985
    %v1025 = vunpack.c.l.b16 %v986
    %v1026 = vunpack.c.l.b16 %v987
    %v1027 = vunpack.c.l.b16 %v988
    %v1028 = vunpack.c.l.b16 %v989
    %v1029 = vunpack.c.l.b16 %v990
    %v1030 = vunpack.c.l.b16 %v991
    %v1031 = vunpack.c.l.b16 %v992
    %v1032 = vpack.c.b16 %v1017, %v1016
    %v1033 = vpack.c.b16 %v1019, %v1018
    %v1034 = vpack.c.b16 %v1021, %v1020
    %v1035 = vpack.c.b16 %v1023, %v1022
    %v1036 = vpack.c.b16 %v1025, %v1024
    %v1037 = vpack.c.b16 %v1027, %v1026
    %v1038 = vpack.c.b16 %v1029, %v1028
    %v1039 = vpack.c.b16 %v1031, %v1030
    %1048 = vmatprep.subr.bf16.mxu0 0
    %1049 = vmatpush1.bf16.msra.mxu0 %v1032
    %1050 = vmatprep.subr.bf16.mxu0 0
    %1051 = vmatpush1.bf16.msra.mxu0 %v1033
    %1052 = vmatprep.subr.bf16.mxu0 0
    %1053 = vmatpush1.bf16.msra.mxu0 %v1034
    %1054 = vmatprep.subr.bf16.mxu0 0
    %1055 = vmatpush1.bf16.msra.mxu0 %v1035
    %1056 = vmatprep.subr.bf16.mxu0 0
    %1057 = vmatpush1.bf16.msra.mxu0 %v1036
    %1058 = vmatprep.subr.bf16.mxu0 0
    %1059 = vmatpush1.bf16.msra.mxu0 %v1037
    %1060 = vmatprep.subr.bf16.mxu0 0
    %1061 = vmatpush1.bf16.msra.mxu0 %v1038
    %1062 = vmatprep.subr.bf16.mxu0 0
    %1063 = vmatpush1.bf16.msra.mxu0 %v1039
    %1064 = vmatprep.subr.bf16.mxu0 0
    %1065 = vmatpush1.bf16.msra.mxu0 0
    %1066 = vmatprep.subr.bf16.mxu0 0
    %1067 = vmatpush1.bf16.msra.mxu0 0
    %1068 = vmatprep.subr.bf16.mxu0 0
    %1069 = vmatpush1.bf16.msra.mxu0 0
    %1070 = vmatprep.subr.bf16.mxu0 0
    %1071 = vmatpush1.bf16.msra.mxu0 0
    %1072 = vmatprep.subr.bf16.mxu0 0
    %1073 = vmatpush1.bf16.msra.mxu0 0
    %1074 = vmatprep.subr.bf16.mxu0 0
    %1075 = vmatpush1.bf16.msra.mxu0 0
    %1076 = vmatprep.subr.bf16.mxu0 0
    %1077 = vmatpush1.bf16.msra.mxu0 0
    %1078 = vmatprep.subr.bf16.mxu0 0
    %1079 = vmatpush1.bf16.msra.mxu0 0
    %1080 = vmatprep.mubr.bf16.mxu0 0
    %1081 = vmatmul.mubr.bf16.gmra.mrb[0].mxu0 %v976
    %v1082 = vpop.f32.mrb[0].mxu0
    %v1083 = vadd.f32 %v998, %v1082
    %v1084 = vpop.f32.mrb[0].mxu0
    %v1085 = vpop.f32.mrb[0].mxu0
    %v1086 = vpop.f32.mrb[0].mxu0
    %1087 = vdwg.mxu0
    %v1088 = vmax.f32 %v1083, 0.0
    %v1089 = vpack.c.bf16 %v1088, %v1088
    %v1090 = vld [vmem:[%s7] sm:$0xf]
    %v1091 = vld [vmem:[%s7 + $0x4] sm:$0xf]
    %v1092 = vld [vmem:[%s7 + $0x8] sm:$0xf]
    %v1093 = vld [vmem:[%s7 + $0xc] sm:$0xf]
    %v1094 = vld [vmem:[%s7 + $0x10] sm:$0xf]
    %v1095 = vld [vmem:[%s7 + $0x14] sm:$0xf]
    %v1096 = vld [vmem:[%s7 + $0x18] sm:$0xf]
    %v1097 = vld [vmem:[%s7 + $0x1c] sm:$0xf]
    %v1098 = vld [vmem:[%s7 + $0x20] sm:$0xf]
    %v1099 = vld [vmem:[%s7 + $0x24] sm:$0xf]
    %v1100 = vld [vmem:[%s7 + $0x28] sm:$0xf]
    %v1101 = vld [vmem:[%s7 + $0x2c] sm:$0xf]
    %v1102 = vld [vmem:[%s7 + $0x30] sm:$0xf]
    %v1103 = vld [vmem:[%s7 + $0x34] sm:$0xf]
    %v1104 = vld [vmem:[%s7 + $0x38] sm:$0xf]
    %v1105 = vld [vmem:[%s7 + $0x3c] sm:$0xf]
    %v1106 = vld [vmem:[%s8] sm:$0x1]
    %v1108 = vlaneseq
    %v1109 = vshrl.u32 %v1108, 7
    %v1110 = vsub.s32 0, %v1109
    %v1111 = vrot.slane %v1106, %v1110
    %v1129 = vunpack.c.l.b16 %v1090
    %v1130 = vunpack.c.l.b16 %v1091
    %v1131 = vunpack.c.l.b16 %v1092
    %v1132 = vunpack.c.l.b16 %v1093
    %v1133 = vunpack.c.l.b16 %v1094
    %v1134 = vunpack.c.l.b16 %v1095
    %v1135 = vunpack.c.l.b16 %v1096
    %v1136 = vunpack.c.l.b16 %v1097
    %v1137 = vunpack.c.l.b16 %v1098
    %v1138 = vunpack.c.l.b16 %v1099
    %v1139 = vunpack.c.l.b16 %v1100
    %v1140 = vunpack.c.l.b16 %v1101
    %v1141 = vunpack.c.l.b16 %v1102
    %v1142 = vunpack.c.l.b16 %v1103
    %v1143 = vunpack.c.l.b16 %v1104
    %v1144 = vunpack.c.l.b16 %v1105
    %v1145 = vpack.c.b16 %v1130, %v1129
    %v1146 = vpack.c.b16 %v1132, %v1131
    %v1147 = vpack.c.b16 %v1134, %v1133
    %v1148 = vpack.c.b16 %v1136, %v1135
    %v1149 = vpack.c.b16 %v1138, %v1137
    %v1150 = vpack.c.b16 %v1140, %v1139
    %v1151 = vpack.c.b16 %v1142, %v1141
    %v1152 = vpack.c.b16 %v1144, %v1143
    %1161 = vmatprep.subr.bf16.mxu0 0
    %1162 = vmatpush1.bf16.msra.mxu0 %v1145
    %1163 = vmatprep.subr.bf16.mxu0 0
    %1164 = vmatpush1.bf16.msra.mxu0 %v1146
    %1165 = vmatprep.subr.bf16.mxu0 0
    %1166 = vmatpush1.bf16.msra.mxu0 %v1147
    %1167 = vmatprep.subr.bf16.mxu0 0
    %1168 = vmatpush1.bf16.msra.mxu0 %v1148
    %1169 = vmatprep.subr.bf16.mxu0 0
    %1170 = vmatpush1.bf16.msra.mxu0 %v1149
    %1171 = vmatprep.subr.bf16.mxu0 0
    %1172 = vmatpush1.bf16.msra.mxu0 %v1150
    %1173 = vmatprep.subr.bf16.mxu0 0
    %1174 = vmatpush1.bf16.msra.mxu0 %v1151
    %1175 = vmatprep.subr.bf16.mxu0 0
    %1176 = vmatpush1.bf16.msra.mxu0 %v1152
    %1177 = vmatprep.subr.bf16.mxu0 0
    %1178 = vmatpush1.bf16.msra.mxu0 0
    %1179 = vmatprep.subr.bf16.mxu0 0
    %1180 = vmatpush1.bf16.msra.mxu0 0
    %1181 = vmatprep.subr.bf16.mxu0 0
    %1182 = vmatpush1.bf16.msra.mxu0 0
    %1183 = vmatprep.subr.bf16.mxu0 0
    %1184 = vmatpush1.bf16.msra.mxu0 0
    %1185 = vmatprep.subr.bf16.mxu0 0
    %1186 = vmatpush1.bf16.msra.mxu0 0
    %1187 = vmatprep.subr.bf16.mxu0 0
    %1188 = vmatpush1.bf16.msra.mxu0 0
    %1189 = vmatprep.subr.bf16.mxu0 0
    %1190 = vmatpush1.bf16.msra.mxu0 0
    %1191 = vmatprep.subr.bf16.mxu0 0
    %1192 = vmatpush1.bf16.msra.mxu0 0
    %1193 = vmatprep.mubr.bf16.mxu0 0
    %1194 = vmatmul.mubr.bf16.gmra.mrb[0].mxu0 %v1089
    %v1195 = vpop.f32.mrb[0].mxu0
    %v1196 = vadd.f32 %v1111, %v1195
    %v1197 = vpop.f32.mrb[0].mxu0
    %v1198 = vpop.f32.mrb[0].mxu0
    %v1199 = vpop.f32.mrb[0].mxu0
    %1200 = vdwg.mxu0
    %vm1201 = vcmask 261120
    %1202 = vst.msk [vmem:[#allocation8] sm:$0xff] %vm1201, %v1196
    // Predicated region
    $region50: #{tpu_custom_call.1} parent=1 // pred_check
      _
    $region51: #{tpu_custom_call.1} parent=1 // pred_check_branch
      %1204 = sbr.rel (0) target = $region53
    $region52: #{tpu_custom_call.1} parent=1 // pred_region
      %s1206 = ssub.s32 128, 128
      %1207 = vsyncadd [#allocation4], %s1206
      %s1209 = sshll.u32 [#allocation8], 4
      %s1210 = int_to_ptr.vmem [resolvable:$true] %s1209
      %1212 = dma.vmem_to_hbm [thread:$0]  %s1210, 128, %s9, [#allocation4]
    $region53: #{tpu_custom_call.1} parent=1 // pred_fallthru
      _
    // Predicated region
    $region54: #{tpu_custom_call.1} parent=1 // pred_check
      _
    $region55: #{tpu_custom_call.1} parent=1 // pred_check_branch
      %1214 = sbr.rel (0) target = $region57
    $region56: #{tpu_custom_call.1} parent=1 // pred_region
      %1215 = dma.done [#allocation4], 128
    $region57: #{tpu_custom_call.1} parent=1 // pred_fallthru
      _
    %1216 = vsyncpa [#allocation3], 1
    %1217 = vsyncpa [#allocation6], 1
    %1218 = vsyncpa [#allocation4], 1

</llo_original>
